<compile_context>
chip_gen: v7x
topology: tpu7x:2x2x1
jax: 0.10.0
libtpu: 0.0.40
codegen_flags: <defaults>
</compile_context>

<pallas_src>
import functools

import jax
import jax.numpy as jnp
import numpy as np
from jax.experimental import pallas as pl
from jax.experimental.pallas import tpu as pltpu

LANE = 128  # padded class dimension (lane-dense MXU output and stores)


def _prm_head_kernel(h_ref, w_ref, t_ref, out_ref, *, num_classes):
    """PRM head epilogue on one batch tile of last-token hidden states.

    h_ref:   (tb, H)     bf16/f32  last-token hidden states        (VMEM)
    w_ref:   (H, LANE)   bf16/f32  v_head weight, zero-padded      (VMEM, resident)
    t_ref:   (tb, 1)     int32     class targets                   (VMEM)
    out_ref: (tb, LANE)  f32       packed results                  (VMEM)
             lane 0 = chosen_end_score, lane 1 = prediction_class (as f32),
             lanes >= 2 = per-row cross-entropy (mean is taken in the wrapper).
    """
    tb = out_ref.shape[0]
    C = num_classes

    # ---- v_head linear on the last token only: [tb,H] @ [H,128] on the MXU --
    values = jnp.dot(h_ref[...], w_ref[...],
                     preferred_element_type=jnp.float32)          # (tb, LANE) f32

    lane = jax.lax.broadcasted_iota(jnp.int32, (tb, LANE), 1)     # class index
    valid = lane < C                                              # real classes
    neg_inf = jnp.float32(-jnp.inf)

    # ---- numerically stable softmax / log-softmax over the C real classes ---
    vmask = jnp.where(valid, values, neg_inf)
    m = jnp.max(vmask, axis=1, keepdims=True)                     # (tb, 1)
    z = vmask - m                                                 # padded -> -inf
    ez = jnp.exp(z)                                               # padded -> 0
    denom = jnp.sum(ez, axis=1, keepdims=True)                    # (tb, 1)
    log_denom = jnp.log(denom)

    # ---- per-row cross-entropy: -log_softmax[target] -------------------------
    # Single broadcast compare against the (tb, 1) int32 target column.
    # TODO(synk): like torch CrossEntropyLoss there is no bounds check on
    # targets; an out-of-range target silently contributes 0 to the loss.
    onehot = jnp.logical_and(lane == t_ref[...], valid)
    nll_terms = jnp.where(onehot, log_denom - z, 0.0)
    nll = jnp.sum(nll_terms, axis=1, keepdims=True)               # (tb, 1)

    # ---- prediction_class: argmax over classes (first-max, torch semantics) --
    is_max = vmask == m                                           # padded lanes never match
    pred = jnp.min(jnp.where(is_max, lane, LANE), axis=1, keepdims=True)
    pred_f = pred.astype(jnp.float32)                             # (tb, 1) exact small ints

    # ---- chosen_end_scores: max softmax over classes [0, C-1) ----------------
    keep = lane < (C - 1)
    zmax_keep = jnp.max(jnp.where(keep, z, neg_inf), axis=1, keepdims=True)
    scores = jnp.exp(zmax_keep) / denom                           # (tb, 1)

    # ---- pack everything into one lane-dense (tb, LANE) tile (unmasked vst) --
    out_ref[...] = jnp.where(lane == 0, scores,
                             jnp.where(lane == 1, pred_f, nll))


def pad_v_head_weight(v_head_weight, dtype=jnp.bfloat16):
    """Zero-pad the [H, C] v_head weight to [H, 128] once at model init."""
    H, C = v_head_weight.shape
    assert C <= LANE
    return jnp.zeros((H, LANE), dtype).at[:, :C].set(v_head_weight.astype(dtype))


def _pick_batch_tile(B, H, itemsize):
    # ~4 MiB per hidden buffer -> 2x buffers + weight + output fit the default
    # scoped VMEM on every generation (16 MiB v5e, 32 MiB v6e/v7x).
    tb = (4 * 1024 * 1024) // max(1, H * itemsize)
    tb = max(16, min(1024, (tb // 16) * 16))
    return tb


def prm_forward(hidden_states, v_head_weight_padded, targets, num_classes,
                *, block_b=None):
    """ProcessRewardModel.forward() head, given backbone hidden states.

    hidden_states:         [B, S, H]   (bf16 or f32)
    v_head_weight_padded:  [H, 128]    (from pad_v_head_weight; transposed vs.
                                        torch nn.Linear's [C, H], zero-padded)
    targets:               [B]         integer class labels
    num_classes:           C (real classes, <= 128)
    """
    B, S, H = hidden_states.shape
    Hw, L = v_head_weight_padded.shape
    assert Hw == H and L == LANE
    C = num_classes
    assert 0 < C <= LANE

    itemsize = jnp.dtype(hidden_states.dtype).itemsize
    if block_b is None:
        tb = _pick_batch_tile(B, H, itemsize)
    else:
        tb = max(16, (int(block_b) // 16) * 16)
    if B <= tb:
        tb = B  # single full-dim batch block — always layout-legal
    grid = (pl.cdiv(B, tb),)

    # Fold the "last token" slice into the BlockSpec: view hidden as (B, S*H)
    # and read only column block S-1 (= elements [(S-1)*H, S*H)) of each row.
    if H % LANE == 0 or S == 1:
        h_in = hidden_states.reshape(B, S * H)                    # free view
        h_spec = pl.BlockSpec((tb, H), lambda i: (i, S - 1))
    else:
        # TODO(synk): lane-unaligned H — fall back to a wrapper-side slice.
        h_in = hidden_states[:, -1, :]
        h_spec = pl.BlockSpec((tb, H), lambda i: (i, 0))

    w_spec = pl.BlockSpec((H, LANE), lambda i: (0, 0))            # resident weight
    t_spec = pl.BlockSpec((tb, 1), lambda i: (i, 0))
    out_spec = pl.BlockSpec((tb, LANE), lambda i: (i, 0))

    targets_2d = targets.astype(jnp.int32).reshape(B, 1)

    packed = pl.pallas_call(
        functools.partial(_prm_head_kernel, num_classes=C),
        out_shape=jax.ShapeDtypeStruct((B, LANE), jnp.float32),
        grid=grid,
        in_specs=[h_spec, w_spec, t_spec],
        out_specs=out_spec,
        compiler_params=pltpu.CompilerParams(
            dimension_semantics=("parallel",)),
    )(h_in, v_head_weight_padded, targets_2d)

    # Mean over exactly B rows (out_shape is (B, LANE); padded grid rows are
    # never written), so no extra masking is needed for partial last blocks.
    return {
        "loss": jnp.mean(packed[:, 2]),
        "chosen_end_scores": packed[:, 0],
        "prediction_class": packed[:, 1].astype(jnp.int32),
    }


if __name__ == "__main__":
    # Small shapes consistent with the module: batch=8, seq=8, hidden=128, head_dim=3
    B, S, H, C = 8, 8, 128, 3
    key = jax.random.PRNGKey(0)
    k_h, k_w, k_t = jax.random.split(key, 3)

    # bf16 inputs (halved HBM traffic); kernel accumulates in f32 on the MXU.
    hidden_states = jax.random.normal(k_h, (B, S, H), dtype=jnp.float32).astype(jnp.bfloat16)
    v_head_weight = (jax.random.normal(k_w, (H, C), dtype=jnp.float32)
                     / jnp.sqrt(H)).astype(jnp.bfloat16)
    targets = jax.random.randint(k_t, (B,), 0, C, dtype=jnp.int32)

    # Pad once (model init), reuse every forward call.
    w_pad = pad_v_head_weight(v_head_weight, jnp.bfloat16)

    out = prm_forward(hidden_states, w_pad, targets, num_classes=C)
    out = jax.tree_util.tree_map(jax.block_until_ready, out)

    # pure-JAX reference (f32 math on the same bf16 values)
    h_last32 = hidden_states[:, -1, :].astype(jnp.float32)
    w32 = v_head_weight.astype(jnp.float32)
    values_ref = h_last32 @ w32                                   # [B, C]
    logz = jax.nn.log_softmax(values_ref, axis=1)
    loss_ref = -jnp.mean(logz[jnp.arange(B), targets])
    sm = jax.nn.softmax(values_ref, axis=1)
    pred_ref = jnp.argmax(sm, axis=1).astype(jnp.int32)
    scores_ref = jnp.max(sm[:, :-1], axis=1)

    assert np.allclose(np.asarray(out["loss"]), np.asarray(loss_ref), atol=1e-3)
    assert np.array_equal(np.asarray(out["prediction_class"]), np.asarray(pred_ref))
    assert np.allclose(np.asarray(out["chosen_end_scores"]),
                       np.asarray(scores_ref), atol=1e-3)

    print("KERNEL_OK")
</pallas_src>

<mosaic_0001>
module attributes {stable_mosaic.version = 11 : i64} {
  func.func @_prm_head_kernel(%arg0: i32, %arg1: memref<8x128xbf16, #tpu.memory_space<vmem>>, %arg2: memref<128x128xbf16, #tpu.memory_space<vmem>>, %arg3: memref<8x1xi32, #tpu.memory_space<vmem>>, %arg4: memref<8x128xf32, #tpu.memory_space<vmem>>) attributes {dimension_semantics = [#tpu.dimension_semantics<parallel>], iteration_bounds = array<i64: 1>, scalar_prefetch = 0 : i64, scratch_operands = 0 : i64, tpu.core_type = #tpu.core_type<tc>, window_params = [{transform_indices = @transform_0, window_bounds = array<i64: 8, 128>}, {pipeline_mode = #tpu.pipeline_mode<synchronous>, transform_indices = @transform_1, window_bounds = array<i64: 128, 128>}, {transform_indices = @transform_2, window_bounds = array<i64: 8, 1>}, {transform_indices = @transform_3, window_bounds = array<i64: 8, 128>}]} {
    %c0 = arith.constant 0 : index
    %c0_0 = arith.constant 0 : index
    %0 = vector.load %arg1[%c0, %c0_0] : memref<8x128xbf16, #tpu.memory_space<vmem>>, vector<8x128xbf16>
    %c0_1 = arith.constant 0 : index
    %c0_2 = arith.constant 0 : index
    %1 = vector.load %arg2[%c0_1, %c0_2] : memref<128x128xbf16, #tpu.memory_space<vmem>>, vector<128x128xbf16>
    %cst = arith.constant dense<0.000000e+00> : vector<8x128xf32>
    %2 = tpu.matmul %0, %1, %cst {dimension_numbers = #tpu.dot_dimension_numbers<[1], [0], [0], [1], [0, 0, 1, 1], [], []>} : vector<8x128xbf16>, vector<128x128xbf16>, vector<8x128xf32> -> vector<8x128xf32>
    %3 = tpu.iota {dimensions = array<i32: 1>} : vector<8x128xi32>
    %c3_i32 = arith.constant 3 : i32
    %4 = vector.broadcast %c3_i32 : i32 to vector<8x128xi32>
    %5 = arith.cmpi slt, %3, %4 : vector<8x128xi32>
    %cst_3 = arith.constant 0xFF800000 : f32
    %6 = vector.broadcast %cst_3 : f32 to vector<8x128xf32>
    %7 = arith.select %5, %2, %6 : vector<8x128xi1>, vector<8x128xf32>
    %cst_4 = arith.constant dense<0xFF800000> : vector<8xf32>
    %8 = vector.multi_reduction <maximumf>, %7, %cst_4 [1] : vector<8x128xf32> to vector<8xf32>
    %9 = vector.shape_cast %8 : vector<8xf32> to vector<8x1xf32>
    %10 = vector.broadcast %9 : vector<8x1xf32> to vector<8x128xf32>
    %11 = arith.subf %7, %10 : vector<8x128xf32>
    %12 = math.exp %11 : vector<8x128xf32>
    %cst_5 = arith.constant dense<0.000000e+00> : vector<8xf32>
    %13 = vector.multi_reduction <add>, %12, %cst_5 [1] : vector<8x128xf32> to vector<8xf32>
    %14 = vector.shape_cast %13 : vector<8xf32> to vector<8x1xf32>
    %15 = math.log %14 : vector<8x1xf32>
    %c0_6 = arith.constant 0 : index
    %c0_7 = arith.constant 0 : index
    %16 = vector.load %arg3[%c0_6, %c0_7] : memref<8x1xi32, #tpu.memory_space<vmem>>, vector<8x1xi32>
    %17 = vector.broadcast %16 : vector<8x1xi32> to vector<8x128xi32>
    %18 = arith.cmpi eq, %3, %17 : vector<8x128xi32>
    %19 = arith.andi %18, %5 : vector<8x128xi1>
    %20 = vector.broadcast %15 : vector<8x1xf32> to vector<8x128xf32>
    %21 = arith.subf %20, %11 : vector<8x128xf32>
    %cst_8 = arith.constant 0.000000e+00 : f32
    %22 = vector.broadcast %cst_8 : f32 to vector<8x128xf32>
    %23 = arith.select %19, %21, %22 : vector<8x128xi1>, vector<8x128xf32>
    %cst_9 = arith.constant dense<0.000000e+00> : vector<8xf32>
    %24 = vector.multi_reduction <add>, %23, %cst_9 [1] : vector<8x128xf32> to vector<8xf32>
    %25 = vector.shape_cast %24 : vector<8xf32> to vector<8x1xf32>
    %26 = vector.broadcast %9 : vector<8x1xf32> to vector<8x128xf32>
    %27 = arith.cmpf oeq, %7, %26 : vector<8x128xf32>
    %c128_i32 = arith.constant 128 : i32
    %28 = vector.broadcast %c128_i32 : i32 to vector<8x128xi32>
    %29 = arith.select %27, %3, %28 : vector<8x128xi1>, vector<8x128xi32>
    %cst_10 = arith.constant dense<2147483647> : vector<8xi32>
    %30 = vector.multi_reduction <minsi>, %29, %cst_10 [1] : vector<8x128xi32> to vector<8xi32>
    %31 = vector.shape_cast %30 : vector<8xi32> to vector<8x1xi32>
    %32 = arith.sitofp %31 : vector<8x1xi32> to vector<8x1xf32>
    %c2_i32 = arith.constant 2 : i32
    %33 = vector.broadcast %c2_i32 : i32 to vector<8x128xi32>
    %34 = arith.cmpi slt, %3, %33 : vector<8x128xi32>
    %cst_11 = arith.constant 0xFF800000 : f32
    %35 = vector.broadcast %cst_11 : f32 to vector<8x128xf32>
    %36 = arith.select %34, %11, %35 : vector<8x128xi1>, vector<8x128xf32>
    %cst_12 = arith.constant dense<0xFF800000> : vector<8xf32>
    %37 = vector.multi_reduction <maximumf>, %36, %cst_12 [1] : vector<8x128xf32> to vector<8xf32>
    %38 = vector.shape_cast %37 : vector<8xf32> to vector<8x1xf32>
    %39 = math.exp %38 : vector<8x1xf32>
    %40 = arith.divf %39, %14 : vector<8x1xf32>
    %c0_i32 = arith.constant 0 : i32
    %41 = vector.broadcast %c0_i32 : i32 to vector<8x128xi32>
    %42 = arith.cmpi eq, %3, %41 : vector<8x128xi32>
    %c1_i32 = arith.constant 1 : i32
    %43 = vector.broadcast %c1_i32 : i32 to vector<8x128xi32>
    %44 = arith.cmpi eq, %3, %43 : vector<8x128xi32>
    %45 = vector.shape_cast %32 : vector<8x1xf32> to vector<8x1xf32>
    %46 = vector.broadcast %45 : vector<8x1xf32> to vector<8x128xf32>
    %47 = vector.shape_cast %25 : vector<8x1xf32> to vector<8x1xf32>
    %48 = vector.broadcast %47 : vector<8x1xf32> to vector<8x128xf32>
    %49 = arith.select %44, %46, %48 : vector<8x128xi1>, vector<8x128xf32>
    %50 = vector.shape_cast %40 : vector<8x1xf32> to vector<8x1xf32>
    %51 = vector.broadcast %50 : vector<8x1xf32> to vector<8x128xf32>
    %52 = arith.select %42, %51, %49 : vector<8x128xi1>, vector<8x128xf32>
    %c0_13 = arith.constant 0 : index
    %c0_14 = arith.constant 0 : index
    %53 = vector.load %arg4[%c0_13, %c0_14] : memref<8x128xf32, #tpu.memory_space<vmem>>, vector<8x128xf32>
    tpu.vector_store %arg4[%c0_13, %c0_14], %52 {strides = array<i32>} : memref<8x128xf32, #tpu.memory_space<vmem>>, vector<8x128xf32>,
    return
  }
  func.func @transform_0(%arg0: i32) -> (i32, i32) {
    %c7_i32 = arith.constant 7 : i32
    %c0_i32 = arith.constant 0 : i32
    return %arg0, %c7_i32 : i32, i32
  }
  func.func @transform_1(%arg0: i32) -> (i32, i32) {
    %c0_i32 = arith.constant 0 : i32
    %c0_i32_0 = arith.constant 0 : i32
    %c0_i32_1 = arith.constant 0 : i32
    return %c0_i32, %c0_i32_0 : i32, i32
  }
  func.func @transform_2(%arg0: i32) -> (i32, i32) {
    %c0_i32 = arith.constant 0 : i32
    %c0_i32_0 = arith.constant 0 : i32
    return %arg0, %c0_i32 : i32, i32
  }
  func.func @transform_3(%arg0: i32) -> (i32, i32) {
    %c0_i32 = arith.constant 0 : i32
    %c0_i32_0 = arith.constant 0 : i32
    return %arg0, %c0_i32 : i32, i32
  }
}

</mosaic_0001>

<llo_original>
// kernel: tpu_custom_call.1
$region0: #{tpu_custom_call.1}
  #allocation0 [shape = 'u32[]', space=smem, size = 0x4, offset = 0x4, fixed_abs, tag = 'smem constant byte address 0x4 - core index']
  #allocation1 [shape = 'u32[144,128]{1,0:T(1,128)}', space=vmem, size = 0x12000, scoped, tag = 'internal scratch']
  %s0 = inlined_call_operand.hbm [shape: bf16[8,1024], index: 0, kind: input, shape index: {}]
  %s1 = inlined_call_operand.hbm [shape: bf16[128,128], index: 1, kind: input, shape index: {}]
  %s2 = inlined_call_operand.vmem [shape: s32[8,1], index: 2, kind: input, shape index: {}]
  %s3 = inlined_call_operand.hbm [shape: f32[8,128], index: 3, kind: output, shape index: {}]
  %s4 = sld [smem:[#allocation0]]
  $region30: #{tpu_custom_call.1} parent=0
    _
  %s6 = ssub.s32 1, %s4
  %s7 = scalar_select 0, %s6, %s4
  $region1: #{tpu_custom_call.1} parent=0
    #allocation2 [shape = 'u8[2048]{0}', space=vmem, size = 0x800, scoped, tag = 'input window, operand 0, single buffered']
    #allocation3 [shape = 's32[1]{0}', space=sflag, size = 0x4, scoped, tag = 'scoped memory for tpu_custom_call.1']
    #allocation4 [shape = 's32[1]{0}', space=sflag, size = 0x4, scoped, tag = 'scoped memory for tpu_custom_call.1']
    #allocation5 [shape = 'u8[32768]{0}', space=vmem, size = 0x8000, scoped, tag = 'input window, operand 1, single buffered']
    #allocation6 [shape = 's32[1]{0}', space=sflag, size = 0x4, scoped, tag = 'scoped memory for tpu_custom_call.1']
    #allocation7 [shape = 'u8[4096]{0}', space=vmem, size = 0x1000, scoped, tag = 'output window, operand 0, single buffered']
    %8 = vsyncpa [#allocation3], 0
    %9 = vsyncpa [#allocation6], 0
    %10 = vsyncpa [#allocation4], 0
    // Predicated region
    $region2: #{tpu_custom_call.1} parent=1 // pred_check
      _
    $region3: #{tpu_custom_call.1} parent=1 // pred_check_branch
      %12 = sbr.rel (0) target = $region5
    $region4: #{tpu_custom_call.1} parent=1 // pred_region
      %s14 = ssub.s32 64, 64
      %15 = vsyncadd [#allocation3], %s14
      %s16 = scalar_lea.hbm %s0, 448
      %s18 = sshll.u32 [#allocation2], 4
      %s19 = int_to_ptr.vmem [resolvable:$true] %s18
      %21 = dma.hbm_to_vmem [thread:$0]  %s16, 64, %s19, [#allocation3]
    $region5: #{tpu_custom_call.1} parent=1 // pred_fallthru
      _
    // Predicated region
    $region6: #{tpu_custom_call.1} parent=1 // pred_check
      _
    $region7: #{tpu_custom_call.1} parent=1 // pred_check_branch
      %23 = sbr.rel (0) target = $region9
    $region8: #{tpu_custom_call.1} parent=1 // pred_region
      %s25 = ssub.s32 1024, 1024
      %26 = vsyncadd [#allocation6], %s25
      %s27 = sshll.u32 [#allocation5], 4
      %s28 = int_to_ptr.vmem [resolvable:$true] %s27
      %33 = dma.hbm_to_vmem [thread:$0]  %s1, 1024, %s28, [#allocation6], 64, 64, 4
    $region9: #{tpu_custom_call.1} parent=1 // pred_fallthru
      _
    // Predicated region
    $region10: #{tpu_custom_call.1} parent=1 // pred_check
      _
    $region11: #{tpu_custom_call.1} parent=1 // pred_check_branch
      %35 = sbr.rel (0) target = $region13
    $region12: #{tpu_custom_call.1} parent=1 // pred_region
      _
    $region13: #{tpu_custom_call.1} parent=1 // pred_fallthru
      _
    // Predicated region
    $region14: #{tpu_custom_call.1} parent=1 // pred_check
      _
    $region15: #{tpu_custom_call.1} parent=1 // pred_check_branch
      %37 = sbr.rel (0) target = $region17
    $region16: #{tpu_custom_call.1} parent=1 // pred_region
      %38 = dma.done [#allocation3], 64
    $region17: #{tpu_custom_call.1} parent=1 // pred_fallthru
      _
    // Predicated region
    $region18: #{tpu_custom_call.1} parent=1 // pred_check
      _
    $region19: #{tpu_custom_call.1} parent=1 // pred_check_branch
      %40 = sbr.rel (0) target = $region21
    $region20: #{tpu_custom_call.1} parent=1 // pred_region
      %41 = dma.done [#allocation6], 1024
    $region21: #{tpu_custom_call.1} parent=1 // pred_fallthru
      _
    %v43 = vld [vmem:[#allocation2] sm:$0xf]
    %v44 = vld [vmem:[#allocation5] sm:$0xf]
    %v45 = vld [vmem:[#allocation5 + $0x4] sm:$0xf]
    %v46 = vld [vmem:[#allocation5 + $0x8] sm:$0xf]
    %v47 = vld [vmem:[#allocation5 + $0xc] sm:$0xf]
    %v48 = vld [vmem:[#allocation5 + $0x10] sm:$0xf]
    %v49 = vld [vmem:[#allocation5 + $0x14] sm:$0xf]
    %v50 = vld [vmem:[#allocation5 + $0x18] sm:$0xf]
    %v51 = vld [vmem:[#allocation5 + $0x1c] sm:$0xf]
    %v52 = vld [vmem:[#allocation5 + $0x20] sm:$0xf]
    %v53 = vld [vmem:[#allocation5 + $0x24] sm:$0xf]
    %v54 = vld [vmem:[#allocation5 + $0x28] sm:$0xf]
    %v55 = vld [vmem:[#allocation5 + $0x2c] sm:$0xf]
    %v56 = vld [vmem:[#allocation5 + $0x30] sm:$0xf]
    %v57 = vld [vmem:[#allocation5 + $0x34] sm:$0xf]
    %v58 = vld [vmem:[#allocation5 + $0x38] sm:$0xf]
    %v59 = vld [vmem:[#allocation5 + $0x3c] sm:$0xf]
    %v76 = vunpack.c.l.b16 %v44
    %v77 = vunpack.c.l.b16 %v45
    %v78 = vunpack.c.l.b16 %v46
    %v79 = vunpack.c.l.b16 %v47
    %v80 = vunpack.c.l.b16 %v48
    %v81 = vunpack.c.l.b16 %v49
    %v82 = vunpack.c.l.b16 %v50
    %v83 = vunpack.c.l.b16 %v51
    %v84 = vunpack.c.l.b16 %v52
    %v85 = vunpack.c.l.b16 %v53
    %v86 = vunpack.c.l.b16 %v54
    %v87 = vunpack.c.l.b16 %v55
    %v88 = vunpack.c.l.b16 %v56
    %v89 = vunpack.c.l.b16 %v57
    %v90 = vunpack.c.l.b16 %v58
    %v91 = vunpack.c.l.b16 %v59
    %v92 = vpack.c.b16 %v77, %v76
    %v93 = vpack.c.b16 %v79, %v78
    %v94 = vpack.c.b16 %v81, %v80
    %v95 = vpack.c.b16 %v83, %v82
    %v96 = vpack.c.b16 %v85, %v84
    %v97 = vpack.c.b16 %v87, %v86
    %v98 = vpack.c.b16 %v89, %v88
    %v99 = vpack.c.b16 %v91, %v90
    %108 = vmatprep.subr.bf16.mxu0 0
    %109 = vmatpush1.bf16.msra.mxu0 %v92
    %110 = vmatprep.subr.bf16.mxu0 0
    %111 = vmatpush1.bf16.msra.mxu0 %v93
    %112 = vmatprep.subr.bf16.mxu0 0
    %113 = vmatpush1.bf16.msra.mxu0 %v94
    %114 = vmatprep.subr.bf16.mxu0 0
    %115 = vmatpush1.bf16.msra.mxu0 %v95
    %116 = vmatprep.subr.bf16.mxu0 0
    %117 = vmatpush1.bf16.msra.mxu0 %v96
    %118 = vmatprep.subr.bf16.mxu0 0
    %119 = vmatpush1.bf16.msra.mxu0 %v97
    %120 = vmatprep.subr.bf16.mxu0 0
    %121 = vmatpush1.bf16.msra.mxu0 %v98
    %122 = vmatprep.subr.bf16.mxu0 0
    %123 = vmatpush1.bf16.msra.mxu0 %v99
    %124 = vmatprep.subr.bf16.mxu0 0
    %125 = vmatpush1.bf16.msra.mxu0 0
    %126 = vmatprep.subr.bf16.mxu0 0
    %127 = vmatpush1.bf16.msra.mxu0 0
    %128 = vmatprep.subr.bf16.mxu0 0
    %129 = vmatpush1.bf16.msra.mxu0 0
    %130 = vmatprep.subr.bf16.mxu0 0
    %131 = vmatpush1.bf16.msra.mxu0 0
    %132 = vmatprep.subr.bf16.mxu0 0
    %133 = vmatpush1.bf16.msra.mxu0 0
    %134 = vmatprep.subr.bf16.mxu0 0
    %135 = vmatpush1.bf16.msra.mxu0 0
    %136 = vmatprep.subr.bf16.mxu0 0
    %137 = vmatpush1.bf16.msra.mxu0 0
    %138 = vmatprep.subr.bf16.mxu0 0
    %139 = vmatpush1.bf16.msra.mxu0 0
    %140 = vmatprep.mubr.bf16.mxu0 0
    %141 = vmatmul.mubr.bf16.gmra.mrb[0].mxu0 %v43
    %v142 = vpop.f32.mrb[0].mxu0
    %v143 = vadd.f32 0.0, %v142
    %v144 = vpop.f32.mrb[0].mxu0
    %v145 = vpop.f32.mrb[0].mxu0
    %v146 = vpop.f32.mrb[0].mxu0
    %147 = vdwg.mxu0
    %v148 = vlaneseq
    %v149 = vand.u32 %v148, 127
    %vm150 = vcmp.lt.s32.totalorder %v149, 3
    %v151 = vsel %vm150, %v143, -inf
    %152 = vmax.xlane.f32.xlu0 %v151
    %v153 = vpop.xlane.xlu0 %152
    %v154 = vsub.f32 %v151, %v153
    %v155 = vmul.f32 %v154, 1.442695
    %v156 = vpow.pop %v155
    %157 = vadd.xlane.f32.xlu0 %v156
    %v158 = vpop.xlane.xlu0 %157
    %v159 = vlog2.pop %v158
    %v160 = vmul.f32 %v159, 0.6931472
    %v161 = vld [vmem:[%s2] sm:$0xff]
    %162 = vset.pattern.permute.xlu0 0
    %163 = vperm.xlu0 %162, %v161
    %v164 = vpop.permute.xlu0 %163
    %vm165 = vcmp.eq.s32.totalorder %v149, %v164
    %vm166 = vmand %vm165, %vm150
    %v167 = vsub.f32 %v160, %v154
    %v168 = vsel %vm166, %v167, 0.0
    %169 = vadd.xlane.f32.xlu0 %v168
    %v170 = vpop.xlane.xlu0 %169
    %vm171 = vcmp.eq.f32.partialorder %v151, %v153
    %v172 = vsel %vm171, %v149, 128
    %v173 = vand.u32 %v172, 65535
    %v174 = vshra.s32 %v172, 16
    %v175 = vcvt.s32.f32 %v173
    %v176 = vcvt.s32.f32 %v174
    %177 = vmin.xlane.f32.xlu0 %v176
    %v178 = vpop.xlane.xlu0 %177
    %vm179 = vcmp.eq.f32.partialorder %v176, %v178
    %v180 = vsel %vm179, %v175, inf
    %181 = vmin.xlane.f32.xlu0 %v180
    %v182 = vpop.xlane.xlu0 %181
    %v183 = vcvt.f32.s32 %v182
    %v184 = vcvt.f32.s32 %v178
    %v185 = vshll.u32 %v184, 16
    %v186 = vadd.s32 %v185, %v183
    %v187 = vcvt.s32.f32 %v186
    %vm188 = vcmp.lt.s32.totalorder %v149, 2
    %v189 = vsel %vm188, %v154, -inf
    %190 = vmax.xlane.f32.xlu0 %v189
    %v191 = vpop.xlane.xlu0 %190
    %v192 = vmul.f32 %v191, 1.442695
    %v193 = vpow.pop %v192
    %v194 = vrcp.pop %v158
    %v195 = vmul.f32 %v193, %v194
    %vm196 = vcmp.eq.s32.totalorder %v149, 0
    %vm197 = vcmp.eq.s32.totalorder %v149, 1
    %v198 = vsel %vm197, %v187, %v170
    %v199 = vsel %vm196, %v195, %v198
    %200 = vst [vmem:[#allocation7] sm:$0xff] %v199
    // Predicated region
    $region22: #{tpu_custom_call.1} parent=1 // pred_check
      _
    $region23: #{tpu_custom_call.1} parent=1 // pred_check_branch
      %202 = sbr.rel (0) target = $region25
    $region24: #{tpu_custom_call.1} parent=1 // pred_region
      %s204 = ssub.s32 128, 128
      %205 = vsyncadd [#allocation4], %s204
      %s207 = sshll.u32 [#allocation7], 4
      %s208 = int_to_ptr.vmem [resolvable:$true] %s207
      %210 = dma.vmem_to_hbm [thread:$0]  %s208, 128, %s3, [#allocation4]
    $region25: #{tpu_custom_call.1} parent=1 // pred_fallthru
      _
    // Predicated region
    $region26: #{tpu_custom_call.1} parent=1 // pred_check
      _
    $region27: #{tpu_custom_call.1} parent=1 // pred_check_branch
      %212 = sbr.rel (0) target = $region29
    $region28: #{tpu_custom_call.1} parent=1 // pred_region
      %213 = dma.done [#allocation4], 128
    $region29: #{tpu_custom_call.1} parent=1 // pred_fallthru
      _
    %214 = vsyncpa [#allocation3], 1
    %215 = vsyncpa [#allocation6], 1
    %216 = vsyncpa [#allocation4], 1

</llo_original>
